<compile_context>
chip_gen: v6e
topology: v6e:2x2x1
jax: 0.10.0
libtpu: 0.0.40
codegen_flags: <defaults>
</compile_context>

<pallas_src>
import functools

import jax
import jax.numpy as jnp
from jax.experimental import pallas as pl
from jax.experimental.pallas import tpu as pltpu


_LANE = 128
_K_COLLAPSE_MAX = 2048   # collapse the K grid axis when fin <= this


def _round_up(a, m):
    return ((a + m - 1) // m) * m


# ---------------------------------------------------------------------------
# Kernel bodies
# ---------------------------------------------------------------------------

def _activation(z, act):
    """Trace-time activation select (z is f32)."""
    if act == "mish":
        # mish(z) = z * tanh(softplus(z)) = z * (t - 1) / (t + 1), t = (1 + e^z)^2.
        # Clamp before exp for overflow safety; mish(z) == z (to f32 eps) for z > 20.
        zc = jnp.minimum(z, 20.0)
        e = jnp.exp(zc)
        t = (1.0 + e) * (1.0 + e)
        return z * ((t - 1.0) / (t + 1.0))     # exact divide: parity with torch mish
    if act == "relu":
        return jnp.maximum(z, 0.0)
    if act == "tanh":
        return jnp.tanh(z)
    if act is None:
        return z
    raise ValueError(f"unsupported activation: {act}")


def _epilogue(z, p_ref, act):
    z = z + p_ref[0:1, :]                      # bias (broadcast over rows)
    z = _activation(z, act)
    z = z * p_ref[1:2, :] + p_ref[2:3, :]      # BatchNorm1d(eval) folded scale/shift
    # Dropout: identity at inference.
    return z


def _dense_kernel_2d(x_ref, w_ref, p_ref, o_ref, *, act):
    # Single K panel: one MXU matmul (f32 accumulation) + fused epilogue.
    z = jnp.dot(x_ref[...], w_ref[...], preferred_element_type=jnp.float32)
    o_ref[...] = _epilogue(z, p_ref, act).astype(o_ref.dtype)


def _dense_kernel_3d(x_ref, w_ref, p_ref, o_ref, acc_ref, *, act):
    # Large-fin path: K reduction with an f32 VMEM accumulator.
    k = pl.program_id(2)

    @pl.when(k == 0)
    def _():
        acc_ref[...] = jnp.zeros_like(acc_ref)

    acc_ref[...] += jnp.dot(x_ref[...], w_ref[...],
                            preferred_element_type=jnp.float32)

    @pl.when(k == pl.num_programs(2) - 1)
    def _():
        o_ref[...] = _epilogue(acc_ref[...], p_ref, act).astype(o_ref.dtype)


# ---------------------------------------------------------------------------
# Tile planning
# ---------------------------------------------------------------------------

def _k_plan(fin):
    """Returns (TK, Kp). Collapse K (single block, no padding) when fin is modest."""
    if fin <= _K_COLLAPSE_MAX:
        return fin, fin
    tk = 1024 if fin >= 4096 else 512
    return tk, _round_up(fin, tk)


def _pick_tm(m):
    # Skinny / moderate batch: one full-height block (legal: equals full dim).
    # NOTE: for bf16 inputs a TM < 16 wastes half a packed vreg; negligible here.
    if m <= 512:
        return m
    return 512          # multiple of 8; trailing partial block is masked on write-back


def _pick_tn(fout, target_lanes):
    if fout <= _LANE:
        return fout                          # single block == full dim
    nb = pl.cdiv(fout, _LANE)                # number of 128-lane chunks
    # Prefer >= 2 N blocks so v7x's two TensorCores both get work on the
    # "parallel" axes; v5e/v6e (1 TC) are unaffected.
    max_chunks = max(1, nb // 2)
    chunks = max(1, min(target_lanes // _LANE, max_chunks))
    return _LANE * chunks


# ---------------------------------------------------------------------------
# Public API
# ---------------------------------------------------------------------------

def prepare_dense_params(w, bias, gamma, beta, running_mean, running_var,
                         *, eps=1e-5, compute_dtype=jnp.float32):
    """One-time (parameter-load-time) preparation.

    w: [fout, fin] (PyTorch nn.Linear layout).

    Returns (w_prep, params):
      w_prep : [Kp, fout] in compute_dtype (transposed; K zero-padded only when
               the large-fin 3-D reduction path will be used).
      params : (3, fout) f32 = stacked [bias, bn_scale, bn_shift]  (single DMA
               per output tile).
    """
    fout, fin = w.shape
    _, kp = _k_plan(fin)
    w_t = w.T.astype(compute_dtype)
    if kp != fin:
        w_t = jnp.zeros((kp, fout), compute_dtype).at[:fin, :].set(w_t)

    bn_scale = gamma / jnp.sqrt(running_var + eps)
    bn_shift = beta - running_mean * bn_scale
    params = jnp.stack([bias.astype(jnp.float32),
                        bn_scale.astype(jnp.float32),
                        bn_shift.astype(jnp.float32)], axis=0)
    return w_t, params


def dense_forward(x, w_prep, params, *, act="mish", out_dtype=jnp.float32):
    """y = Dropout(BN_eval(act(x @ W^T + b)))  (dropout = identity at inference).

    x: [..., fin]; (w_prep, params) from prepare_dense_params().
    """
    *lead, fin = x.shape
    m = 1
    for d in lead:
        m *= d
    fout = params.shape[1]
    kp = w_prep.shape[0]
    compute_dtype = w_prep.dtype

    tk, kp_plan = _k_plan(fin)
    assert kp == kp_plan, "w_prep was prepared for a different fin"
    collapse_k = (kp == fin)

    x2 = x.reshape(m, fin).astype(compute_dtype)
    if kp != fin:
        # 3-D reduction path: K must be zero-padded (garbage would corrupt the
        # accumulator).  M/N are never padded: partial blocks are masked.
        x2 = jnp.zeros((m, kp), compute_dtype).at[:, :fin].set(x2)

    tm = _pick_tm(m)
    tn = _pick_tn(fout, target_lanes=1024 if m <= 64 else 512)
    grid_m = pl.cdiv(m, tm)
    grid_n = pl.cdiv(fout, tn)

    item_c = jnp.dtype(compute_dtype).itemsize
    item_o = jnp.dtype(out_dtype).itemsize
    cost = pl.CostEstimate(
        flops=int(2 * m * fin * fout),
        transcendentals=int(2 * m * fout),
        bytes_accessed=int(m * kp * item_c * grid_n          # x re-read per N block
                           + kp * fout * item_c * grid_m     # W re-read per M block
                           + 3 * fout * 4 * grid_m
                           + m * fout * item_o),
    )

    compiler_params_2d = pltpu.CompilerParams(
        dimension_semantics=("parallel", "parallel"),
        vmem_limit_bytes=48 * 1024 * 1024,   # <= v7x 64 MiB physical VMEM
    )
    compiler_params_3d = pltpu.CompilerParams(
        dimension_semantics=("parallel", "parallel", "arbitrary"),
        vmem_limit_bytes=48 * 1024 * 1024,
    )

    if collapse_k:
        # Deeper buffering on the weight stream (dominant HBM stream in the
        # skinny-M / GEMV regime), only when there are enough steps to fill it.
        if grid_n >= 3:
            w_spec = pl.BlockSpec((kp, tn), lambda i, j: (0, j),
                                  pipeline_mode=pl.Buffered(3))
        else:
            w_spec = pl.BlockSpec((kp, tn), lambda i, j: (0, j))

        out = pl.pallas_call(
            functools.partial(_dense_kernel_2d, act=act),
            out_shape=jax.ShapeDtypeStruct((m, fout), out_dtype),
            grid_spec=pltpu.PrefetchScalarGridSpec(
                num_scalar_prefetch=0,
                grid=(grid_m, grid_n),
                in_specs=[
                    pl.BlockSpec((tm, kp), lambda i, j: (i, 0)),
                    w_spec,
                    pl.BlockSpec((3, tn), lambda i, j: (0, j)),
                ],
                out_specs=pl.BlockSpec((tm, tn), lambda i, j: (i, j)),
            ),
            compiler_params=compiler_params_2d,
            cost_estimate=cost,
        )(x2, w_prep, params)
    else:
        grid_k = kp // tk
        out = pl.pallas_call(
            functools.partial(_dense_kernel_3d, act=act),
            out_shape=jax.ShapeDtypeStruct((m, fout), out_dtype),
            grid_spec=pltpu.PrefetchScalarGridSpec(
                num_scalar_prefetch=0,
                grid=(grid_m, grid_n, grid_k),
                in_specs=[
                    pl.BlockSpec((tm, tk), lambda i, j, k: (i, k)),
                    pl.BlockSpec((tk, tn), lambda i, j, k: (k, j)),
                    pl.BlockSpec((3, tn), lambda i, j, k: (0, j)),
                ],
                out_specs=pl.BlockSpec((tm, tn), lambda i, j, k: (i, j)),
                scratch_shapes=[pltpu.VMEM((tm, tn), jnp.float32)],
            ),
            compiler_params=compiler_params_3d,
            cost_estimate=cost,
        )(x2, w_prep, params)

    return out.reshape(*lead, fout)


# ---------------------------------------------------------------------------
# Self-test
# ---------------------------------------------------------------------------

if __name__ == "__main__":
    root = jax.random.PRNGKey(0)

    def make_case(seed, n, fin, fout):
        k = jax.random.fold_in(root, seed)
        kx, kw, kb, kg, kbe, km, kv = jax.random.split(k, 7)
        # PyTorch nn.Linear default init: U(-1/sqrt(fin), 1/sqrt(fin)).
        bound = 1.0 / (fin ** 0.5)
        w = jax.random.uniform(kw, (fout, fin), jnp.float32, -bound, bound)
        b = jax.random.uniform(kb, (fout,), jnp.float32, -bound, bound)
        # Non-trivial BatchNorm1d eval stats to exercise the folded scale/shift.
        gamma = 1.0 + 0.1 * jax.random.normal(kg, (fout,), jnp.float32)
        beta = 0.1 * jax.random.normal(kbe, (fout,), jnp.float32)
        mean = 0.1 * jax.random.normal(km, (fout,), jnp.float32)
        var = jnp.abs(1.0 + 0.1 * jax.random.normal(kv, (fout,), jnp.float32))
        x = jax.random.normal(kx, (n, fin), jnp.float32)
        return x, w, b, gamma, beta, mean, var

    def reference(x, w, b, gamma, beta, mean, var, eps=1e-5):
        z = x @ w.T + b
        z = z * jnp.tanh(jax.nn.softplus(z))
        return (z - mean) / jnp.sqrt(var + eps) * gamma + beta

    def check(seed, n, fin, fout, compute_dtype, atol, rtol):
        x, w, b, gamma, beta, mean, var = make_case(seed, n, fin, fout)
        w_prep, params = prepare_dense_params(
            w, b, gamma, beta, mean, var, compute_dtype=compute_dtype)
        out = dense_forward(x, w_prep, params)
        out = jax.block_until_ready(out)
        ref = reference(x, w, b, gamma, beta, mean, var)
        assert out.shape == (n, fout), f"bad shape {out.shape}"
        err = float(jnp.max(jnp.abs(out - ref)))
        assert jnp.allclose(out, ref, atol=atol, rtol=rtol), (
            f"mismatch n={n} fin={fin} fout={fout} dtype={compute_dtype}: "
            f"max abs err {err}")

    # 1) The module's own regime (batch=8, fin=16, fout=32): f32 MXU path.
    check(1, 8, 16, 32, jnp.float32, 1e-2, 1e-2)
    # 2) Same shapes with bf16 MXU inputs (opt-in; f32 accumulation).
    check(2, 8, 16, 32, jnp.bfloat16, 5e-2, 5e-2)
    # 3) Multi-block N with a partial trailing block (fout not a tile multiple).
    check(3, 8, 16, 160, jnp.float32, 1e-2, 1e-2)
    # 4) Large-fin 3-D reduction path (K grid axis + f32 VMEM accumulator).
    check(4, 8, 2176, 96, jnp.float32, 3e-2, 3e-2)

    print("KERNEL_OK")
</pallas_src>

<mosaic_0001>
module attributes {stable_mosaic.version = 11 : i64} {
  func.func @_dense_kernel_2d(%arg0: i32, %arg1: i32, %arg2: memref<8x16xf32, #tpu.memory_space<vmem>>, %arg3: memref<16x32xf32, #tpu.memory_space<vmem>>, %arg4: memref<3x32xf32, #tpu.memory_space<vmem>>, %arg5: memref<8x32xf32, #tpu.memory_space<vmem>>) attributes {dimension_semantics = [#tpu.dimension_semantics<parallel>, #tpu.dimension_semantics<parallel>], iteration_bounds = array<i64: 1, 1>, scalar_prefetch = 0 : i64, scratch_operands = 0 : i64, tpu.core_type = #tpu.core_type<tc>, window_params = [{transform_indices = @transform_0, window_bounds = array<i64: 8, 16>}, {transform_indices = @transform_1, window_bounds = array<i64: 16, 32>}, {transform_indices = @transform_2, window_bounds = array<i64: 3, 32>}, {transform_indices = @transform_3, window_bounds = array<i64: 8, 32>}]} {
    %c0 = arith.constant 0 : index
    %c0_0 = arith.constant 0 : index
    %0 = vector.load %arg2[%c0, %c0_0] : memref<8x16xf32, #tpu.memory_space<vmem>>, vector<8x16xf32>
    %c0_1 = arith.constant 0 : index
    %c0_2 = arith.constant 0 : index
    %1 = vector.load %arg3[%c0_1, %c0_2] : memref<16x32xf32, #tpu.memory_space<vmem>>, vector<16x32xf32>
    %cst = arith.constant dense<0.000000e+00> : vector<8x32xf32>
    %2 = tpu.matmul %0, %1, %cst {dimension_numbers = #tpu.dot_dimension_numbers<[1], [0], [0], [1], [0, 0, 1, 1], [], []>} : vector<8x16xf32>, vector<16x32xf32>, vector<8x32xf32> -> vector<8x32xf32>
    %c0_3 = arith.constant 0 : index
    %c0_4 = arith.constant 0 : index
    %3 = vector.load %arg4[%c0_3, %c0_4] : memref<3x32xf32, #tpu.memory_space<vmem>>, vector<1x32xf32>
    %4 = vector.broadcast %3 : vector<1x32xf32> to vector<8x32xf32>
    %5 = arith.addf %2, %4 : vector<8x32xf32>
    %cst_5 = arith.constant 2.000000e+01 : f32
    %6 = vector.broadcast %cst_5 : f32 to vector<8x32xf32>
    %7 = arith.minimumf %5, %6 : vector<8x32xf32>
    %8 = math.exp %7 : vector<8x32xf32>
    %cst_6 = arith.constant 1.000000e+00 : f32
    %9 = vector.broadcast %cst_6 : f32 to vector<8x32xf32>
    %10 = arith.addf %9, %8 : vector<8x32xf32>
    %cst_7 = arith.constant 1.000000e+00 : f32
    %11 = vector.broadcast %cst_7 : f32 to vector<8x32xf32>
    %12 = arith.addf %11, %8 : vector<8x32xf32>
    %13 = arith.mulf %10, %12 : vector<8x32xf32>
    %cst_8 = arith.constant 1.000000e+00 : f32
    %14 = vector.broadcast %cst_8 : f32 to vector<8x32xf32>
    %15 = arith.subf %13, %14 : vector<8x32xf32>
    %cst_9 = arith.constant 1.000000e+00 : f32
    %16 = vector.broadcast %cst_9 : f32 to vector<8x32xf32>
    %17 = arith.addf %13, %16 : vector<8x32xf32>
    %18 = arith.divf %15, %17 : vector<8x32xf32>
    %19 = arith.mulf %5, %18 : vector<8x32xf32>
    %c1 = arith.constant 1 : index
    %c0_10 = arith.constant 0 : index
    %20 = vector.load %arg4[%c1, %c0_10] : memref<3x32xf32, #tpu.memory_space<vmem>>, vector<1x32xf32>
    %21 = vector.broadcast %20 : vector<1x32xf32> to vector<8x32xf32>
    %22 = arith.mulf %19, %21 : vector<8x32xf32>
    %c2 = arith.constant 2 : index
    %c0_11 = arith.constant 0 : index
    %23 = vector.load %arg4[%c2, %c0_11] : memref<3x32xf32, #tpu.memory_space<vmem>>, vector<1x32xf32>
    %24 = vector.broadcast %23 : vector<1x32xf32> to vector<8x32xf32>
    %25 = arith.addf %22, %24 : vector<8x32xf32>
    %c0_12 = arith.constant 0 : index
    %c0_13 = arith.constant 0 : index
    %26 = vector.load %arg5[%c0_12, %c0_13] : memref<8x32xf32, #tpu.memory_space<vmem>>, vector<8x32xf32>
    tpu.vector_store %arg5[%c0_12, %c0_13], %25 {strides = array<i32>} : memref<8x32xf32, #tpu.memory_space<vmem>>, vector<8x32xf32>,
    return
  }
  func.func @transform_0(%arg0: i32, %arg1: i32) -> (i32, i32) {
    %c0_i32 = arith.constant 0 : i32
    %c0_i32_0 = arith.constant 0 : i32
    return %arg0, %c0_i32 : i32, i32
  }
  func.func @transform_1(%arg0: i32, %arg1: i32) -> (i32, i32) {
    %c0_i32 = arith.constant 0 : i32
    %c0_i32_0 = arith.constant 0 : i32
    return %c0_i32, %arg1 : i32, i32
  }
  func.func @transform_2(%arg0: i32, %arg1: i32) -> (i32, i32) {
    %c0_i32 = arith.constant 0 : i32
    %c0_i32_0 = arith.constant 0 : i32
    return %c0_i32, %arg1 : i32, i32
  }
  func.func @transform_3(%arg0: i32, %arg1: i32) -> (i32, i32) {
    %c0_i32 = arith.constant 0 : i32
    return %arg0, %arg1 : i32, i32
  }
}

</mosaic_0001>

<llo_original>
// kernel: tpu_custom_call.1
$region0: #{tpu_custom_call.1}
  #allocation0 [shape = 'u32[]', space=smem, size = 0x4, offset = 0x4, fixed_abs, tag = 'smem constant byte address 0x4 - core index']
  #allocation1 [shape = 'u32[144,128]{1,0:T(1,128)}', space=vmem, size = 0x12000, scoped, tag = 'internal scratch']
  %s0 = inlined_call_operand.hbm [shape: f32[8,16], index: 0, kind: input, shape index: {}]
  %s1 = inlined_call_operand.hbm [shape: f32[16,32], index: 1, kind: input, shape index: {}]
  %s2 = inlined_call_operand.hbm [shape: f32[3,32], index: 2, kind: input, shape index: {}]
  %s3 = inlined_call_operand.hbm [shape: f32[8,32], index: 3, kind: output, shape index: {}]
  %s4 = sld [smem:[#allocation0]]
  $region34: #{tpu_custom_call.1} parent=0
    _
  %s6 = ssub.s32 1, %s4
  %s7 = scalar_select 0, %s6, %s4
  $region1: #{tpu_custom_call.1} parent=0
    #allocation2 [shape = 'u8[4096]{0}', space=vmem, size = 0x1000, scoped, tag = 'input window, operand 0, single buffered']
    #allocation3 [shape = 's32[1]{0}', space=sflag, size = 0x4, scoped, tag = 'scoped memory for tpu_custom_call.1']
    #allocation4 [shape = 's32[1]{0}', space=sflag, size = 0x4, scoped, tag = 'scoped memory for tpu_custom_call.1']
    #allocation5 [shape = 'u8[8192]{0}', space=vmem, size = 0x2000, scoped, tag = 'input window, operand 1, single buffered']
    #allocation6 [shape = 's32[1]{0}', space=sflag, size = 0x4, scoped, tag = 'scoped memory for tpu_custom_call.1']
    #allocation7 [shape = 'u8[2048]{0}', space=vmem, size = 0x800, scoped, tag = 'input window, operand 2, single buffered']
    #allocation8 [shape = 'u8[4096]{0}', space=vmem, size = 0x1000, scoped, tag = 'output window, operand 0, single buffered']
    %8 = vsyncpa [#allocation3], 0
    %9 = vsyncpa [#allocation6], 0
    %10 = vsyncpa [#allocation4], 0
    // Predicated region
    $region2: #{tpu_custom_call.1} parent=1 // pred_check
      _
    $region3: #{tpu_custom_call.1} parent=1 // pred_check_branch
      %12 = sbr.rel (0) target = $region5
    $region4: #{tpu_custom_call.1} parent=1 // pred_region
      %s14 = ssub.s32 128, 128
      %15 = vsyncadd [#allocation3], %s14
      %s17 = sshll.u32 [#allocation2], 4
      %s18 = int_to_ptr.vmem [resolvable:$true] %s17
      %20 = dma.hbm_to_vmem [thread:$0]  %s0, 128, %s18, [#allocation3]
    $region5: #{tpu_custom_call.1} parent=1 // pred_fallthru
      _
    // Predicated region
    $region6: #{tpu_custom_call.1} parent=1 // pred_check
      _
    $region7: #{tpu_custom_call.1} parent=1 // pred_check_branch
      %22 = sbr.rel (0) target = $region9
    $region8: #{tpu_custom_call.1} parent=1 // pred_region
      %s24 = ssub.s32 256, 256
      %25 = vsyncadd [#allocation6], %s24
      %s26 = sshll.u32 [#allocation5], 4
      %s27 = int_to_ptr.vmem [resolvable:$true] %s26
      %32 = dma.hbm_to_vmem [thread:$0]  %s1, 256, %s27, [#allocation6], 128, 128, 8
    $region9: #{tpu_custom_call.1} parent=1 // pred_fallthru
      _
    // Predicated region
    $region10: #{tpu_custom_call.1} parent=1 // pred_check
      _
    $region11: #{tpu_custom_call.1} parent=1 // pred_check_branch
      %34 = sbr.rel (0) target = $region13
    $region12: #{tpu_custom_call.1} parent=1 // pred_region
      %s36 = ssub.s32 64, 64
      %37 = vsyncadd [#allocation6], %s36
      %s39 = sshll.u32 [#allocation7], 4
      %s40 = int_to_ptr.vmem [resolvable:$true] %s39
      %42 = dma.hbm_to_vmem [thread:$0]  %s2, 64, %s40, [#allocation6]
    $region13: #{tpu_custom_call.1} parent=1 // pred_fallthru
      _
    // Predicated region
    $region14: #{tpu_custom_call.1} parent=1 // pred_check
      _
    $region15: #{tpu_custom_call.1} parent=1 // pred_check_branch
      %44 = sbr.rel (0) target = $region17
    $region16: #{tpu_custom_call.1} parent=1 // pred_region
      %45 = dma.done [#allocation3], 128
    $region17: #{tpu_custom_call.1} parent=1 // pred_fallthru
      _
    // Predicated region
    $region18: #{tpu_custom_call.1} parent=1 // pred_check
      _
    $region19: #{tpu_custom_call.1} parent=1 // pred_check_branch
      %47 = sbr.rel (0) target = $region21
    $region20: #{tpu_custom_call.1} parent=1 // pred_region
      %48 = dma.done [#allocation6], 256
    $region21: #{tpu_custom_call.1} parent=1 // pred_fallthru
      _
    // Predicated region
    $region22: #{tpu_custom_call.1} parent=1 // pred_check
      _
    $region23: #{tpu_custom_call.1} parent=1 // pred_check_branch
      %50 = sbr.rel (0) target = $region25
    $region24: #{tpu_custom_call.1} parent=1 // pred_region
      %51 = dma.done [#allocation6], 64
    $region25: #{tpu_custom_call.1} parent=1 // pred_fallthru
      _
    %v52 = vld [vmem:[#allocation2] sm:$0xff]
    %v53 = vld [vmem:[#allocation5] sm:$0xff]
    %v54 = vld [vmem:[#allocation5 + $0x8] sm:$0xff]
    %v55 = vld [vmem:[#allocation7] sm:$0x1]
    %v56 = vlaneseq
    %v57 = vshrl.u32 %v56, 7
    %v58 = vsub.s32 0, %v57
    %v59 = vrot.slane %v55, %v58
    %vm60 = vcmask 130048
    %v62 = vsel %vm60, %v52, 0
    %64 = vmatprep.subr.mxu0 0.0
    %65 = vmatpush1.msra.mxu0 0.0
    %66 = vmatprep.subr.mxu0 0.0
    %67 = vmatpush1.msra.mxu0 0.0
    %68 = vmatprep.subr.mxu0 0.0
    %69 = vmatpush1.msra.mxu0 0.0
    %70 = vmatprep.subr.mxu0 0.0
    %71 = vmatpush1.msra.mxu0 0.0
    %72 = vmatprep.subr.mxu0 0.0
    %73 = vmatpush1.msra.mxu0 0.0
    %74 = vmatprep.subr.mxu0 0.0
    %75 = vmatpush1.msra.mxu0 0.0
    %76 = vmatprep.subr.mxu0 0.0
    %77 = vmatpush1.msra.mxu0 0.0
    %78 = vmatprep.subr.mxu0 0.0
    %79 = vmatpush1.msra.mxu0 0.0
    %80 = vmatprep.subr.mxu0 0.0
    %81 = vmatpush1.msra.mxu0 0.0
    %82 = vmatprep.subr.mxu0 0.0
    %83 = vmatpush1.msra.mxu0 0.0
    %84 = vmatprep.subr.mxu0 0.0
    %85 = vmatpush1.msra.mxu0 0.0
    %86 = vmatprep.subr.mxu0 0.0
    %87 = vmatpush1.msra.mxu0 0.0
    %88 = vmatprep.subr.mxu0 0.0
    %89 = vmatpush1.msra.mxu0 0.0
    %90 = vmatprep.subr.mxu0 0.0
    %91 = vmatpush1.msra.mxu0 0.0
    %92 = vmatprep.subr.mxu0 0.0
    %93 = vmatpush1.msra.mxu0 %v54
    %94 = vmatprep.subr.mxu0 0.0
    %95 = vmatpush1.msra.mxu0 %v53
    %96 = vmatprep.subr.mxu0 0.0
    %97 = vmatpush2.msra.mxu0 0.0
    %98 = vmatprep.subr.mxu0 0.0
    %99 = vmatpush2.msra.mxu0 0.0
    %100 = vmatprep.subr.mxu0 0.0
    %101 = vmatpush2.msra.mxu0 0.0
    %102 = vmatprep.subr.mxu0 0.0
    %103 = vmatpush2.msra.mxu0 0.0
    %104 = vmatprep.subr.mxu0 0.0
    %105 = vmatpush2.msra.mxu0 0.0
    %106 = vmatprep.subr.mxu0 0.0
    %107 = vmatpush2.msra.mxu0 0.0
    %108 = vmatprep.subr.mxu0 0.0
    %109 = vmatpush2.msra.mxu0 0.0
    %110 = vmatprep.subr.mxu0 0.0
    %111 = vmatpush2.msra.mxu0 0.0
    %112 = vmatprep.subr.mxu0 0.0
    %113 = vmatpush2.msra.mxu0 0.0
    %114 = vmatprep.subr.mxu0 0.0
    %115 = vmatpush2.msra.mxu0 0.0
    %116 = vmatprep.subr.mxu0 0.0
    %117 = vmatpush2.msra.mxu0 0.0
    %118 = vmatprep.subr.mxu0 0.0
    %119 = vmatpush2.msra.mxu0 0.0
    %120 = vmatprep.subr.mxu0 0.0
    %121 = vmatpush2.msra.mxu0 0.0
    %122 = vmatprep.subr.mxu0 0.0
    %123 = vmatpush2.msra.mxu0 0.0
    %124 = vmatprep.subr.mxu0 0.0
    %125 = vmatpush2.msra.mxu0 0.0
    %126 = vmatprep.subr.mxu0 0.0
    %127 = vmatpush2.msra.mxu0 0.0
    %128 = vmatprep.mubr.f32.mxu0 0.0
    %129 = vmatmul.mubr.f32.gmra.mxu0 %v62
    %v130 = vpop.f32.mrf.mxu0
    %v131 = vadd.f32 %v59, %v130
    %v132 = vpop.f32.mrf.mxu0
    %133 = vdwg.mxu0
    %v134 = vmin.f32 %v131, 20.0
    %v135 = vmul.f32 %v134, 1.442695
    %v136 = vpow.pop %v135
    %v137 = vadd.f32 %v136, 1.0
    %v138 = vmul.f32 %v137, %v137
    %v139 = vsub.f32 %v138, 1.0
    %v140 = vadd.f32 %v138, 1.0
    %v141 = vrcp.pop %v140
    %v142 = vmul.f32 %v139, %v141
    %v143 = vmul.f32 %v131, %v142
    %v144 = vld [vmem:[#allocation7 + $0x1] sm:$0x1]
    %v145 = vlaneseq
    %v146 = vshrl.u32 %v145, 7
    %v147 = vsub.s32 0, %v146
    %v148 = vrot.slane %v144, %v147
    %v149 = vmul.f32 %v143, %v148
    %v150 = vld [vmem:[#allocation7 + $0x2] sm:$0x1]
    %v151 = vlaneseq
    %v152 = vshrl.u32 %v151, 7
    %v153 = vsub.s32 0, %v152
    %v154 = vrot.slane %v150, %v153
    %v155 = vadd.f32 %v149, %v154
    %vm156 = vcmask 261120
    %157 = vst.msk [vmem:[#allocation8] sm:$0xff] %vm156, %v155
    // Predicated region
    $region26: #{tpu_custom_call.1} parent=1 // pred_check
      _
    $region27: #{tpu_custom_call.1} parent=1 // pred_check_branch
      %159 = sbr.rel (0) target = $region29
    $region28: #{tpu_custom_call.1} parent=1 // pred_region
      %s161 = ssub.s32 128, 128
      %162 = vsyncadd [#allocation4], %s161
      %s164 = sshll.u32 [#allocation8], 4
      %s165 = int_to_ptr.vmem [resolvable:$true] %s164
      %167 = dma.vmem_to_hbm [thread:$0]  %s165, 128, %s3, [#allocation4]
    $region29: #{tpu_custom_call.1} parent=1 // pred_fallthru
      _
    // Predicated region
    $region30: #{tpu_custom_call.1} parent=1 // pred_check
      _
    $region31: #{tpu_custom_call.1} parent=1 // pred_check_branch
      %169 = sbr.rel (0) target = $region33
    $region32: #{tpu_custom_call.1} parent=1 // pred_region
      %170 = dma.done [#allocation4], 128
    $region33: #{tpu_custom_call.1} parent=1 // pred_fallthru
      _
    %171 = vsyncpa [#allocation3], 1
    %172 = vsyncpa [#allocation6], 1
    %173 = vsyncpa [#allocation4], 1

</llo_original>
